<compile_context>
chip_gen: v5e
topology: v5e:2x2
jax: 0.10.0
libtpu: 0.0.40
codegen_flags: <defaults>
</compile_context>

<pallas_src>
import functools
import jax
import jax.numpy as jnp
from jax.experimental import pallas as pl
from jax.experimental.pallas import tpu as pltpu


_LANE = 128      # lane width (last dim)
_SUBLANE = 8     # f32 sublane count (second-to-last dim)
_VMEM_BUDGET = 48 << 20   # leave headroom under the 64 MiB v7x VMEM ceiling


def _round_up(n, m):
    return ((n + m - 1) // m) * m


def _pad_to(arr, shape):
    pads = [(0, t - s) for s, t in zip(arr.shape, shape)]
    if any(p[1] < 0 for p in pads):
        raise ValueError(f"cannot pad {arr.shape} to {shape}")
    if all(p == (0, 0) for p in pads):
        return arr
    return jnp.pad(arr, pads)


def _weight_vmem_bytes(pdims, compute_dtype):
    csize = jnp.dtype(compute_dtype).itemsize
    return sum(
        pdims[l] * pdims[l + 1] * csize + pdims[l + 1] * 4
        for l in range(len(pdims) - 1)
    )


def _choose_tm(M, pdims, compute_dtype, out_dtype):
    """Largest row tile that keeps resident weights + activation tiles in VMEM."""
    csize = jnp.dtype(compute_dtype).itemsize
    osize = jnp.dtype(out_dtype).itemsize
    wbytes = _weight_vmem_bytes(pdims, compute_dtype)
    widest = max(pdims)
    for cand in (512, 256, 128):
        if M < cand:
            continue
        act_bytes = 2 * cand * (pdims[0] * csize + pdims[-1] * osize)
        inter_bytes = cand * widest * 4           # f32 layer-to-layer activation
        if wbytes + act_bytes + inter_bytes <= _VMEM_BUDGET:
            return cand
    return _round_up(min(M, 128), _SUBLANE)


def _make_fused_mlp_kernel(num_layers):
    """Builds kernel(x_ref, w0, b0, ..., w{L-1}, b{L-1}, o_ref)."""

    def kernel(*refs):
        x_ref = refs[0]
        o_ref = refs[1 + 2 * num_layers]
        # Activations stay on-chip for the whole stack; accumulate in f32
        # end-to-end (bias add / casts in f32 -> safe VPU path on v5e too).
        cur = x_ref[...].astype(jnp.float32)
        for l in range(num_layers):
            w_ref = refs[1 + 2 * l]
            b_ref = refs[2 + 2 * l]
            acc = jnp.dot(
                cur.astype(w_ref.dtype),          # bf16 or f32 into the MXU
                w_ref[...],
                preferred_element_type=jnp.float32,
            )
            cur = acc + b_ref[...].astype(jnp.float32)
        o_ref[...] = cur.astype(o_ref.dtype)

    return kernel


def mlp_pallas(x, params, *, compute_dtype=jnp.float32, tm=None):
    """Fused MLP forward: ((x @ w0 + b0) @ w1 + b1) ... in a single pallas_call.

    x:      (M, D0)
    params: list of (w_i, b_i) with w_i: (D_i, D_{i+1}), b_i: (1, D_{i+1})
            (weights stored as (in, out), i.e. already transposed vs nn.Linear).
    """
    M, K0 = x.shape
    num_layers = len(params)
    dims = [K0] + [w.shape[1] for (w, _) in params]
    for l, (w, b) in enumerate(params):
        assert w.shape == (dims[l], dims[l + 1]), (w.shape, l)
        assert b.shape == (1, dims[l + 1]), (b.shape, l)

    out_dtype = x.dtype

    # Lane-dense padding: every feature dim -> multiple of 128. Zero padding of
    # W rows/cols and bias keeps padded activation columns exactly zero, so the
    # math is unchanged.
    pdims = [_round_up(d, _LANE) for d in dims]

    if tm is None:
        tm = _choose_tm(M, pdims, compute_dtype, out_dtype)
    tm = _round_up(tm, _SUBLANE)
    Mp = _round_up(M, tm)

    x_p = _pad_to(x.astype(compute_dtype), (Mp, pdims[0]))

    flat_inputs = [x_p]
    in_specs = [pl.BlockSpec((tm, pdims[0]), lambda i: (i, 0))]
    for l, (w, b) in enumerate(params):
        wp = _pad_to(w.astype(compute_dtype), (pdims[l], pdims[l + 1]))
        bp = _pad_to(b.astype(jnp.float32), (1, pdims[l + 1]))
        flat_inputs += [wp, bp]
        in_specs += [
            # Constant index_map: weight/bias blocks stay VMEM-resident across
            # the whole row-tile grid (DMA'd once, never re-fetched).
            pl.BlockSpec((pdims[l], pdims[l + 1]), lambda i: (0, 0)),
            pl.BlockSpec((1, pdims[l + 1]), lambda i: (0, 0)),
        ]

    out_spec = pl.BlockSpec((tm, pdims[-1]), lambda i: (i, 0))

    # VMEM limit: double-buffered activation tiles + resident weights, clamped
    # to the 64 MiB v7x ceiling while lifting the 32 MiB default when needed.
    # TODO(synk): for hidden sizes whose weight stack exceeds VMEM, add K/N
    # grid axes and tile the weights instead of holding them whole in VMEM.
    csize = jnp.dtype(compute_dtype).itemsize
    osize = jnp.dtype(out_dtype).itemsize
    vmem_bytes = (
        2 * tm * (pdims[0] * csize + pdims[-1] * osize)
        + _weight_vmem_bytes(pdims, compute_dtype)
        + tm * max(pdims) * 4
    )
    vmem_limit = int(min(max(vmem_bytes + (4 << 20), 32 << 20), 64 << 20))

    out = pl.pallas_call(
        _make_fused_mlp_kernel(num_layers),
        out_shape=jax.ShapeDtypeStruct((Mp, pdims[-1]), out_dtype),
        grid_spec=pltpu.PrefetchScalarGridSpec(
            num_scalar_prefetch=0,
            grid=(Mp // tm,),
            in_specs=in_specs,
            out_specs=out_spec,
        ),
        compiler_params=pltpu.CompilerParams(
            dimension_semantics=("parallel",),
            vmem_limit_bytes=vmem_limit,
        ),
    )(*flat_inputs)

    # Strip batch and feature padding.
    return out[:M, : dims[-1]]


@functools.partial(jax.jit, static_argnames=("compute_dtype",))
def mlp_forward(x, params, compute_dtype=jnp.float32):
    return mlp_pallas(x, params, compute_dtype=compute_dtype)


class MLPPallas:
    """Mirrors the PyTorch MLP: forward = chained Linear layers (no activation)."""

    def __init__(self, input_dim, hidden_units, init_std=0.001, key=None,
                 dtype=jnp.float32):
        if len(hidden_units) == 0:
            raise ValueError("hidden_units is empty")
        dims = [input_dim] + list(hidden_units)
        key = jax.random.PRNGKey(42) if key is None else key
        self.params = []
        for i in range(len(dims) - 1):
            key, kw, kb = jax.random.split(key, 3)
            fan_in, fan_out = dims[i], dims[i + 1]
            # Weight stored as (in, out) so the kernel does a lane-dense
            # x @ W + b (== nn.Linear's x @ W.T + b).
            w = (jax.random.normal(kw, (fan_in, fan_out), jnp.float32) * init_std).astype(dtype)
            b = (jax.random.normal(kb, (1, fan_out), jnp.float32) * init_std).astype(dtype)
            self.params.append((w, b))

    def __call__(self, x, compute_dtype=jnp.float32):
        return mlp_forward(x, self.params, compute_dtype=compute_dtype)


def _reference(x, params):
    cur = x
    for w, b in params:
        cur = cur @ w + b
    return cur


if __name__ == "__main__":
    key = jax.random.PRNGKey(0)
    batch, input_dim = 8, 32
    hidden_units = [64, 32, 16]

    x = jax.random.normal(key, (batch, input_dim), jnp.float32)

    mlp = MLPPallas(input_dim, hidden_units, init_std=0.001,
                    key=jax.random.PRNGKey(1))

    ref = _reference(x, mlp.params)

    # f32 path (strict numerical check vs. pure-JAX reference).
    out = jax.block_until_ready(mlp(x))
    assert out.shape == (batch, hidden_units[-1]), out.shape
    assert jnp.allclose(out, ref, atol=1e-5, rtol=1e-5), "f32 mismatch vs reference"

    # Ragged batch (exercises row-tile zero-padding + slice-off path).
    key, kx = jax.random.split(key)
    x13 = jax.random.normal(kx, (13, input_dim), jnp.float32)
    out13 = jax.block_until_ready(mlp(x13))
    assert out13.shape == (13, hidden_units[-1]), out13.shape
    assert jnp.allclose(out13, _reference(x13, mlp.params), atol=1e-5, rtol=1e-5), \
        "ragged-batch mismatch vs reference"

    # bf16 MXU fast path (v6e/v7x); f32 accumulation, relaxed tolerance.
    out_bf16 = jax.block_until_ready(mlp(x, compute_dtype=jnp.bfloat16))
    assert out_bf16.shape == (batch, hidden_units[-1]), out_bf16.shape
    assert jnp.allclose(out_bf16, ref, atol=2e-2, rtol=2e-2), "bf16 mismatch vs reference"

    print("KERNEL_OK")
</pallas_src>

<mosaic_0001>
module attributes {stable_mosaic.version = 11 : i64} {
  func.func @kernel(%arg0: i32, %arg1: memref<8x128xf32, #tpu.memory_space<vmem>>, %arg2: memref<128x128xf32, #tpu.memory_space<vmem>>, %arg3: memref<1x128xf32, #tpu.memory_space<vmem>>, %arg4: memref<128x128xf32, #tpu.memory_space<vmem>>, %arg5: memref<1x128xf32, #tpu.memory_space<vmem>>, %arg6: memref<128x128xf32, #tpu.memory_space<vmem>>, %arg7: memref<1x128xf32, #tpu.memory_space<vmem>>, %arg8: memref<8x128xf32, #tpu.memory_space<vmem>>) attributes {dimension_semantics = [#tpu.dimension_semantics<parallel>], iteration_bounds = array<i64: 1>, scalar_prefetch = 0 : i64, scratch_operands = 0 : i64, tpu.core_type = #tpu.core_type<tc>, window_params = [{transform_indices = @transform_0, window_bounds = array<i64: 8, 128>}, {pipeline_mode = #tpu.pipeline_mode<synchronous>, transform_indices = @transform_1, window_bounds = array<i64: 128, 128>}, {pipeline_mode = #tpu.pipeline_mode<synchronous>, transform_indices = @transform_2, window_bounds = array<i64: 1, 128>}, {pipeline_mode = #tpu.pipeline_mode<synchronous>, transform_indices = @transform_3, window_bounds = array<i64: 128, 128>}, {pipeline_mode = #tpu.pipeline_mode<synchronous>, transform_indices = @transform_4, window_bounds = array<i64: 1, 128>}, {pipeline_mode = #tpu.pipeline_mode<synchronous>, transform_indices = @transform_5, window_bounds = array<i64: 128, 128>}, {pipeline_mode = #tpu.pipeline_mode<synchronous>, transform_indices = @transform_6, window_bounds = array<i64: 1, 128>}, {transform_indices = @transform_7, window_bounds = array<i64: 8, 128>}]} {
    %c0 = arith.constant 0 : index
    %c0_0 = arith.constant 0 : index
    %0 = vector.load %arg1[%c0, %c0_0] : memref<8x128xf32, #tpu.memory_space<vmem>>, vector<8x128xf32>
    %c0_1 = arith.constant 0 : index
    %c0_2 = arith.constant 0 : index
    %1 = vector.load %arg2[%c0_1, %c0_2] : memref<128x128xf32, #tpu.memory_space<vmem>>, vector<128x128xf32>
    %cst = arith.constant dense<0.000000e+00> : vector<8x128xf32>
    %2 = tpu.matmul %0, %1, %cst {dimension_numbers = #tpu.dot_dimension_numbers<[1], [0], [0], [1], [0, 0, 1, 1], [], []>} : vector<8x128xf32>, vector<128x128xf32>, vector<8x128xf32> -> vector<8x128xf32>
    %c0_3 = arith.constant 0 : index
    %c0_4 = arith.constant 0 : index
    %3 = vector.load %arg3[%c0_3, %c0_4] : memref<1x128xf32, #tpu.memory_space<vmem>>, vector<1x128xf32>
    %4 = vector.broadcast %3 : vector<1x128xf32> to vector<8x128xf32>
    %5 = arith.addf %2, %4 : vector<8x128xf32>
    %c0_5 = arith.constant 0 : index
    %c0_6 = arith.constant 0 : index
    %6 = vector.load %arg4[%c0_5, %c0_6] : memref<128x128xf32, #tpu.memory_space<vmem>>, vector<128x128xf32>
    %cst_7 = arith.constant dense<0.000000e+00> : vector<8x128xf32>
    %7 = tpu.matmul %5, %6, %cst_7 {dimension_numbers = #tpu.dot_dimension_numbers<[1], [0], [0], [1], [0, 0, 1, 1], [], []>} : vector<8x128xf32>, vector<128x128xf32>, vector<8x128xf32> -> vector<8x128xf32>
    %c0_8 = arith.constant 0 : index
    %c0_9 = arith.constant 0 : index
    %8 = vector.load %arg5[%c0_8, %c0_9] : memref<1x128xf32, #tpu.memory_space<vmem>>, vector<1x128xf32>
    %9 = vector.broadcast %8 : vector<1x128xf32> to vector<8x128xf32>
    %10 = arith.addf %7, %9 : vector<8x128xf32>
    %c0_10 = arith.constant 0 : index
    %c0_11 = arith.constant 0 : index
    %11 = vector.load %arg6[%c0_10, %c0_11] : memref<128x128xf32, #tpu.memory_space<vmem>>, vector<128x128xf32>
    %cst_12 = arith.constant dense<0.000000e+00> : vector<8x128xf32>
    %12 = tpu.matmul %10, %11, %cst_12 {dimension_numbers = #tpu.dot_dimension_numbers<[1], [0], [0], [1], [0, 0, 1, 1], [], []>} : vector<8x128xf32>, vector<128x128xf32>, vector<8x128xf32> -> vector<8x128xf32>
    %c0_13 = arith.constant 0 : index
    %c0_14 = arith.constant 0 : index
    %13 = vector.load %arg7[%c0_13, %c0_14] : memref<1x128xf32, #tpu.memory_space<vmem>>, vector<1x128xf32>
    %14 = vector.broadcast %13 : vector<1x128xf32> to vector<8x128xf32>
    %15 = arith.addf %12, %14 : vector<8x128xf32>
    %c0_15 = arith.constant 0 : index
    %c0_16 = arith.constant 0 : index
    %16 = vector.load %arg8[%c0_15, %c0_16] : memref<8x128xf32, #tpu.memory_space<vmem>>, vector<8x128xf32>
    tpu.vector_store %arg8[%c0_15, %c0_16], %15 {strides = array<i32>} : memref<8x128xf32, #tpu.memory_space<vmem>>, vector<8x128xf32>,
    return
  }
  func.func @transform_0(%arg0: i32) -> (i32, i32) {
    %c0_i32 = arith.constant 0 : i32
    %c0_i32_0 = arith.constant 0 : i32
    return %arg0, %c0_i32 : i32, i32
  }
  func.func @transform_1(%arg0: i32) -> (i32, i32) {
    %c0_i32 = arith.constant 0 : i32
    %c0_i32_0 = arith.constant 0 : i32
    %c0_i32_1 = arith.constant 0 : i32
    return %c0_i32, %c0_i32_0 : i32, i32
  }
  func.func @transform_2(%arg0: i32) -> (i32, i32) {
    %c0_i32 = arith.constant 0 : i32
    %c0_i32_0 = arith.constant 0 : i32
    %c0_i32_1 = arith.constant 0 : i32
    return %c0_i32, %c0_i32_0 : i32, i32
  }
  func.func @transform_3(%arg0: i32) -> (i32, i32) {
    %c0_i32 = arith.constant 0 : i32
    %c0_i32_0 = arith.constant 0 : i32
    %c0_i32_1 = arith.constant 0 : i32
    return %c0_i32, %c0_i32_0 : i32, i32
  }
  func.func @transform_4(%arg0: i32) -> (i32, i32) {
    %c0_i32 = arith.constant 0 : i32
    %c0_i32_0 = arith.constant 0 : i32
    %c0_i32_1 = arith.constant 0 : i32
    return %c0_i32, %c0_i32_0 : i32, i32
  }
  func.func @transform_5(%arg0: i32) -> (i32, i32) {
    %c0_i32 = arith.constant 0 : i32
    %c0_i32_0 = arith.constant 0 : i32
    %c0_i32_1 = arith.constant 0 : i32
    return %c0_i32, %c0_i32_0 : i32, i32
  }
  func.func @transform_6(%arg0: i32) -> (i32, i32) {
    %c0_i32 = arith.constant 0 : i32
    %c0_i32_0 = arith.constant 0 : i32
    %c0_i32_1 = arith.constant 0 : i32
    return %c0_i32, %c0_i32_0 : i32, i32
  }
  func.func @transform_7(%arg0: i32) -> (i32, i32) {
    %c0_i32 = arith.constant 0 : i32
    %c0_i32_0 = arith.constant 0 : i32
    return %arg0, %c0_i32 : i32, i32
  }
}

</mosaic_0001>

<llo_original>
// kernel: mlp_forward.1
$region0: #{mlp_forward.1}
  #allocation0 [shape = 'u32[]', space=smem, size = 0x4, offset = 0x4, fixed_abs, tag = 'smem constant byte address 0x4 - core index']
  #allocation1 [shape = 'u32[72,128]{1,0:T(1,128)}', space=vmem, size = 0x9000, scoped, tag = 'internal scratch']
  %s0 = inlined_call_operand.vmem [shape: f32[8,128], index: 0, kind: input, shape index: {}]
  %s1 = inlined_call_operand.vmem [shape: f32[128,128], index: 1, kind: input, shape index: {}]
  %s2 = inlined_call_operand.vmem [shape: f32[1,128], index: 2, kind: input, shape index: {}]
  %s3 = inlined_call_operand.vmem [shape: f32[128,128], index: 3, kind: input, shape index: {}]
  %s4 = inlined_call_operand.vmem [shape: f32[1,128], index: 4, kind: input, shape index: {}]
  %s5 = inlined_call_operand.vmem [shape: f32[128,128], index: 5, kind: input, shape index: {}]
  %s6 = inlined_call_operand.vmem [shape: f32[1,128], index: 6, kind: input, shape index: {}]
  %s7 = inlined_call_operand.hbm [shape: f32[8,128], index: 7, kind: output, shape index: {}]
  %s8 = sld [smem:[#allocation0]]
  $region38: #{mlp_forward.1} parent=0
    _
  %s10 = ssub.s32 1, %s8
  %s11 = scalar_select 0, %s10, %s8
  $region1: #{mlp_forward.1} parent=0
    #allocation2 [shape = 'u8[4096]{0}', space=vmem, size = 0x1000, scoped, tag = 'output window, operand 0, single buffered']
    #allocation3 [shape = 's32[1]{0}', space=sflag, size = 0x4, scoped, tag = 'scoped memory for mlp_forward.1']
    %12 = vsyncpa [#allocation3], 0
    // Predicated region
    $region2: #{mlp_forward.1} parent=1 // pred_check
      _
    $region3: #{mlp_forward.1} parent=1 // pred_check_branch
      %14 = sbr.rel (0) target = $region5
    $region4: #{mlp_forward.1} parent=1 // pred_region
      _
    $region5: #{mlp_forward.1} parent=1 // pred_fallthru
      _
    // Predicated region
    $region6: #{mlp_forward.1} parent=1 // pred_check
      _
    $region7: #{mlp_forward.1} parent=1 // pred_check_branch
      %16 = sbr.rel (0) target = $region9
    $region8: #{mlp_forward.1} parent=1 // pred_region
      _
    $region9: #{mlp_forward.1} parent=1 // pred_fallthru
      _
    // Predicated region
    $region10: #{mlp_forward.1} parent=1 // pred_check
      _
    $region11: #{mlp_forward.1} parent=1 // pred_check_branch
      %18 = sbr.rel (0) target = $region13
    $region12: #{mlp_forward.1} parent=1 // pred_region
      _
    $region13: #{mlp_forward.1} parent=1 // pred_fallthru
      _
    // Predicated region
    $region14: #{mlp_forward.1} parent=1 // pred_check
      _
    $region15: #{mlp_forward.1} parent=1 // pred_check_branch
      %20 = sbr.rel (0) target = $region17
    $region16: #{mlp_forward.1} parent=1 // pred_region
      _
    $region17: #{mlp_forward.1} parent=1 // pred_fallthru
      _
    // Predicated region
    $region18: #{mlp_forward.1} parent=1 // pred_check
      _
    $region19: #{mlp_forward.1} parent=1 // pred_check_branch
      %22 = sbr.rel (0) target = $region21
    $region20: #{mlp_forward.1} parent=1 // pred_region
      _
    $region21: #{mlp_forward.1} parent=1 // pred_fallthru
      _
    // Predicated region
    $region22: #{mlp_forward.1} parent=1 // pred_check
      _
    $region23: #{mlp_forward.1} parent=1 // pred_check_branch
      %24 = sbr.rel (0) target = $region25
    $region24: #{mlp_forward.1} parent=1 // pred_region
      _
    $region25: #{mlp_forward.1} parent=1 // pred_fallthru
      _
    // Predicated region
    $region26: #{mlp_forward.1} parent=1 // pred_check
      _
    $region27: #{mlp_forward.1} parent=1 // pred_check_branch
      %26 = sbr.rel (0) target = $region29
    $region28: #{mlp_forward.1} parent=1 // pred_region
      _
    $region29: #{mlp_forward.1} parent=1 // pred_fallthru
      _
    %v27 = vld [vmem:[%s0] sm:$0xff]
    %v28 = vld [vmem:[%s1] sm:$0xff]
    %v29 = vld [vmem:[%s1 + $0x8] sm:$0xff]
    %v30 = vld [vmem:[%s1 + $0x10] sm:$0xff]
    %v31 = vld [vmem:[%s1 + $0x18] sm:$0xff]
    %v32 = vld [vmem:[%s1 + $0x20] sm:$0xff]
    %v33 = vld [vmem:[%s1 + $0x28] sm:$0xff]
    %v34 = vld [vmem:[%s1 + $0x30] sm:$0xff]
    %v35 = vld [vmem:[%s1 + $0x38] sm:$0xff]
    %v36 = vld [vmem:[%s1 + $0x40] sm:$0xff]
    %v37 = vld [vmem:[%s1 + $0x48] sm:$0xff]
    %v38 = vld [vmem:[%s1 + $0x50] sm:$0xff]
    %v39 = vld [vmem:[%s1 + $0x58] sm:$0xff]
    %v40 = vld [vmem:[%s1 + $0x60] sm:$0xff]
    %v41 = vld [vmem:[%s1 + $0x68] sm:$0xff]
    %v42 = vld [vmem:[%s1 + $0x70] sm:$0xff]
    %v43 = vld [vmem:[%s1 + $0x78] sm:$0xff]
    %v44 = vld [vmem:[%s2] sm:$0x1]
    %v46 = vperm.slane %v44, 0
    %48 = vmatpush.msra.mxu0 %v43
    %49 = vmatpush.msra.mxu0 %v42
    %50 = vmatpush.msra.mxu0 %v41
    %51 = vmatpush.msra.mxu0 %v40
    %52 = vmatpush.msra.mxu0 %v39
    %53 = vmatpush.msra.mxu0 %v38
    %54 = vmatpush.msra.mxu0 %v37
    %55 = vmatpush.msra.mxu0 %v36
    %56 = vmatpush.msra.mxu0 %v35
    %57 = vmatpush.msra.mxu0 %v34
    %58 = vmatpush.msra.mxu0 %v33
    %59 = vmatpush.msra.mxu0 %v32
    %60 = vmatpush.msra.mxu0 %v31
    %61 = vmatpush.msra.mxu0 %v30
    %62 = vmatpush.msra.mxu0 %v29
    %63 = vmatpush.msra.mxu0 %v28
    %64 = vmatmul.f32.gmra.mxu0 %v27
    %v65 = vpop.f32.mrf.mxu0
    %v66 = vadd.f32 %v46, %v65
    %67 = vdwg.mxu0
    %v68 = vld [vmem:[%s3] sm:$0xff]
    %v69 = vld [vmem:[%s3 + $0x8] sm:$0xff]
    %v70 = vld [vmem:[%s3 + $0x10] sm:$0xff]
    %v71 = vld [vmem:[%s3 + $0x18] sm:$0xff]
    %v72 = vld [vmem:[%s3 + $0x20] sm:$0xff]
    %v73 = vld [vmem:[%s3 + $0x28] sm:$0xff]
    %v74 = vld [vmem:[%s3 + $0x30] sm:$0xff]
    %v75 = vld [vmem:[%s3 + $0x38] sm:$0xff]
    %v76 = vld [vmem:[%s3 + $0x40] sm:$0xff]
    %v77 = vld [vmem:[%s3 + $0x48] sm:$0xff]
    %v78 = vld [vmem:[%s3 + $0x50] sm:$0xff]
    %v79 = vld [vmem:[%s3 + $0x58] sm:$0xff]
    %v80 = vld [vmem:[%s3 + $0x60] sm:$0xff]
    %v81 = vld [vmem:[%s3 + $0x68] sm:$0xff]
    %v82 = vld [vmem:[%s3 + $0x70] sm:$0xff]
    %v83 = vld [vmem:[%s3 + $0x78] sm:$0xff]
    %v84 = vld [vmem:[%s4] sm:$0x1]
    %v86 = vperm.slane %v84, 0
    %88 = vmatpush.msra.mxu0 %v83
    %89 = vmatpush.msra.mxu0 %v82
    %90 = vmatpush.msra.mxu0 %v81
    %91 = vmatpush.msra.mxu0 %v80
    %92 = vmatpush.msra.mxu0 %v79
    %93 = vmatpush.msra.mxu0 %v78
    %94 = vmatpush.msra.mxu0 %v77
    %95 = vmatpush.msra.mxu0 %v76
    %96 = vmatpush.msra.mxu0 %v75
    %97 = vmatpush.msra.mxu0 %v74
    %98 = vmatpush.msra.mxu0 %v73
    %99 = vmatpush.msra.mxu0 %v72
    %100 = vmatpush.msra.mxu0 %v71
    %101 = vmatpush.msra.mxu0 %v70
    %102 = vmatpush.msra.mxu0 %v69
    %103 = vmatpush.msra.mxu0 %v68
    %104 = vmatmul.f32.gmra.mxu0 %v66
    %v105 = vpop.f32.mrf.mxu0
    %v106 = vadd.f32 %v86, %v105
    %107 = vdwg.mxu0
    %v108 = vld [vmem:[%s5] sm:$0xff]
    %v109 = vld [vmem:[%s5 + $0x8] sm:$0xff]
    %v110 = vld [vmem:[%s5 + $0x10] sm:$0xff]
    %v111 = vld [vmem:[%s5 + $0x18] sm:$0xff]
    %v112 = vld [vmem:[%s5 + $0x20] sm:$0xff]
    %v113 = vld [vmem:[%s5 + $0x28] sm:$0xff]
    %v114 = vld [vmem:[%s5 + $0x30] sm:$0xff]
    %v115 = vld [vmem:[%s5 + $0x38] sm:$0xff]
    %v116 = vld [vmem:[%s5 + $0x40] sm:$0xff]
    %v117 = vld [vmem:[%s5 + $0x48] sm:$0xff]
    %v118 = vld [vmem:[%s5 + $0x50] sm:$0xff]
    %v119 = vld [vmem:[%s5 + $0x58] sm:$0xff]
    %v120 = vld [vmem:[%s5 + $0x60] sm:$0xff]
    %v121 = vld [vmem:[%s5 + $0x68] sm:$0xff]
    %v122 = vld [vmem:[%s5 + $0x70] sm:$0xff]
    %v123 = vld [vmem:[%s5 + $0x78] sm:$0xff]
    %v124 = vld [vmem:[%s6] sm:$0x1]
    %v126 = vperm.slane %v124, 0
    %128 = vmatpush.msra.mxu0 %v123
    %129 = vmatpush.msra.mxu0 %v122
    %130 = vmatpush.msra.mxu0 %v121
    %131 = vmatpush.msra.mxu0 %v120
    %132 = vmatpush.msra.mxu0 %v119
    %133 = vmatpush.msra.mxu0 %v118
    %134 = vmatpush.msra.mxu0 %v117
    %135 = vmatpush.msra.mxu0 %v116
    %136 = vmatpush.msra.mxu0 %v115
    %137 = vmatpush.msra.mxu0 %v114
    %138 = vmatpush.msra.mxu0 %v113
    %139 = vmatpush.msra.mxu0 %v112
    %140 = vmatpush.msra.mxu0 %v111
    %141 = vmatpush.msra.mxu0 %v110
    %142 = vmatpush.msra.mxu0 %v109
    %143 = vmatpush.msra.mxu0 %v108
    %144 = vmatmul.f32.gmra.mxu0 %v106
    %v145 = vpop.f32.mrf.mxu0
    %v146 = vadd.f32 %v126, %v145
    %147 = vdwg.mxu0
    %148 = vst [vmem:[#allocation2] sm:$0xff] %v146
    // Predicated region
    $region30: #{mlp_forward.1} parent=1 // pred_check
      _
    $region31: #{mlp_forward.1} parent=1 // pred_check_branch
      %150 = sbr.rel (0) target = $region33
    $region32: #{mlp_forward.1} parent=1 // pred_region
      %152 = vsyncadd [#allocation3], 0
      %s154 = sshll.u32 [#allocation2], 4
      %s155 = int_to_ptr.vmem [resolvable:$true] %s154
      %s156 = sshll.u32 %s7, 4
      %s157 = int_to_ptr.hbm [resolvable:$true] %s156
      %159 = dma.vmem_to_hbm [thread:$0]  %s155, 128, %s157, [#allocation3]
    $region33: #{mlp_forward.1} parent=1 // pred_fallthru
      _
    // Predicated region
    $region34: #{mlp_forward.1} parent=1 // pred_check
      _
    $region35: #{mlp_forward.1} parent=1 // pred_check_branch
      %161 = sbr.rel (0) target = $region37
    $region36: #{mlp_forward.1} parent=1 // pred_region
      %163 = dma.done [#allocation3], 128
    $region37: #{mlp_forward.1} parent=1 // pred_fallthru
      _
    %164 = vsyncpa [#allocation3], 1

</llo_original>
